<compile_context>
chip_gen: v7x
topology: tpu7x:2x2x1
jax: 0.10.0
libtpu: 0.0.40
codegen_flags: <defaults>
</compile_context>

<pallas_src>
import functools

import jax
import jax.numpy as jnp
from jax import lax
from jax.experimental import pallas as pl
from jax.experimental.pallas import tpu as pltpu

NUM_CLASSES = 5
HIGHEST_WEIGHT = 1.0
DECAY_FACTOR = 0.5

_LANES = 128
_SUBLANES = 8
_CHUNK_ROWS = 128          # inner chunk: (128,128) f32 = 16 vregs per intermediate
_MAX_BLOCK_ROWS = 2048     # (2048,128) f32 tile = 1 MiB; 2 inputs x 2 buffers = 4 MiB VMEM
_NUM_SHARDS = 2            # leading "parallel" axis (megacore sharding where available)


def _round_up(x, m):
    return ((x + m - 1) // m) * m


def _weight_table(num_classes, highest_weight, decay_factor):
    """class_weights[label] for label = 1..num_classes, built exactly like the
    PyTorch module (repeated multiplication). Index 0 is an unused dummy."""
    table = [0.0] * (num_classes + 1)
    table[num_classes] = float(highest_weight)
    for i in range(num_classes - 1, 0, -1):
        table[i] = table[i + 1] * float(decay_factor)
    return tuple(table)


def _loss_kernel(q_ref, pred_ref, targ_ref, out_ref, *,
                 num_classes, w_table, block_rows, chunk_rows):
    i = pl.program_id(1)     # inner (reduction) axis

    # Output block index is constant over the inner axis -> out_ref stays
    # VMEM-resident; accumulate into it directly (no scratch, no final copy).
    @pl.when(i == 0)
    def _():
        out_ref[...] = jnp.zeros_like(out_ref)

    num_chunks = block_rows // chunk_rows
    folds = chunk_rows // _SUBLANES

    def body(c, carry):
        r0 = pl.multiple_of(c * chunk_rows, chunk_rows)
        t = targ_ref[pl.ds(r0, chunk_rows), :]
        p = pred_ref[pl.ds(r0, chunk_rows), :]

        # label = 1 + #(interior quantiles < t); weight = w_table[label].
        # q[0] = min and q[num_classes] = max are provably redundant given the
        # max(label,1) clamp and t <= max, so only (num_classes-1) cmp + sel.
        w = jnp.full(t.shape, w_table[1], dtype=jnp.float32)
        for k in range(1, num_classes):
            w = jnp.where(q_ref[k] < t, jnp.float32(w_table[k + 1]), w)

        d = p - t
        wse = w * d * d

        # Fold the chunk to one vreg-shaped (8,128) partial sum (VPU adds only)
        # and add into the resident output block.
        out_ref[...] += wse.reshape(folds, _SUBLANES, _LANES).sum(axis=0)
        return carry

    lax.fori_loop(0, num_chunks, body, 0, unroll=True)


def weighted_class_loss_decay(predictions, targets,
                              num_classes=NUM_CLASSES,
                              highest_weight=HIGHEST_WEIGHT,
                              decay_factor=DECAY_FACTOR,
                              max_block_rows=_MAX_BLOCK_ROWS):
    """predictions, targets: 1-D float arrays of any length N >= 1."""
    predictions = predictions.reshape(-1).astype(jnp.float32)
    targets = targets.reshape(-1).astype(jnp.float32)
    n = targets.shape[0]

    # Glue: sort-based quantiles (linear interpolation, torch.quantile default).
    # TODO(synk): jnp.quantile is an O(N log N) TPU sort outside the kernel and
    # will dominate end-to-end time for large N; cache / subsample / histogram
    # the quantiles at the call site if they can be reused across steps.
    probs = jnp.linspace(0.0, 1.0, num_classes + 1)
    quantiles = jnp.quantile(targets, probs).astype(jnp.float32)

    # ---- tiling -------------------------------------------------------------
    rows_raw = pl.cdiv(n, _LANES)
    block_rows = min(max_block_rows, _round_up(rows_raw, _SUBLANES))
    block_rows = max(block_rows, _SUBLANES)
    chunk_rows = min(_CHUNK_ROWS, block_rows)
    block_rows = _round_up(block_rows, chunk_rows)
    total_blocks = pl.cdiv(rows_raw, block_rows)
    num_shards = _NUM_SHARDS if total_blocks >= _NUM_SHARDS else 1
    blocks_per_shard = pl.cdiv(total_blocks, num_shards)
    rows_padded = num_shards * blocks_per_shard * block_rows
    n_pad = rows_padded * _LANES

    # Zero-pad the tail: padded elements have pred == targ == 0, so their
    # weighted squared error is exactly 0; the mean still divides by true n.
    if n_pad != n:
        predictions = jnp.pad(predictions, (0, n_pad - n))
        targets_padded = jnp.pad(targets, (0, n_pad - n))
    else:
        targets_padded = targets

    pred2d = predictions.reshape(rows_padded, _LANES)
    targ2d = targets_padded.reshape(rows_padded, _LANES)

    kernel = functools.partial(
        _loss_kernel,
        num_classes=num_classes,
        w_table=_weight_table(num_classes, highest_weight, decay_factor),
        block_rows=block_rows,
        chunk_rows=chunk_rows,
    )

    # index_maps receive (shard, inner, *scalar_prefetch_refs)
    data_spec = pl.BlockSpec(
        (block_rows, _LANES),
        lambda s, i, q_ref: (s * blocks_per_shard + i, 0))

    # TODO(synk): on v7x, if a trace shows one TensorCore idle, switch the
    # leading axis to pltpu.CORE_PARALLEL; plain "parallel" is kept here because
    # a size-2 core-parallel axis is not portable to single-TC v5e/v6e.
    partials = pl.pallas_call(
        kernel,
        out_shape=jax.ShapeDtypeStruct((num_shards * _SUBLANES, _LANES),
                                       jnp.float32),
        grid_spec=pltpu.PrefetchScalarGridSpec(
            num_scalar_prefetch=1,                 # quantiles -> SMEM scalars
            grid=(num_shards, blocks_per_shard),
            in_specs=[data_spec, data_spec],
            out_specs=pl.BlockSpec((_SUBLANES, _LANES),
                                   lambda s, i, q_ref: (s, 0)),
        ),
        compiler_params=pltpu.CompilerParams(
            dimension_semantics=("parallel", "arbitrary")),
    )(quantiles, pred2d, targ2d)

    # Final cross-lane/sublane/shard reduction + mean in the wrapper.
    return jnp.sum(partials) / jnp.float32(n)


def _reference_loss(predictions, targets,
                    num_classes=NUM_CLASSES,
                    highest_weight=HIGHEST_WEIGHT,
                    decay_factor=DECAY_FACTOR):
    probs = jnp.linspace(0.0, 1.0, num_classes + 1)
    quantiles = jnp.quantile(targets, probs)
    labels = jnp.searchsorted(quantiles, targets, side="left")
    labels = jnp.maximum(labels, 1)
    w_table = jnp.asarray(_weight_table(num_classes, highest_weight, decay_factor),
                          dtype=jnp.float32)
    weights = w_table[labels]
    return jnp.mean(weights * (predictions - targets) ** 2)


if __name__ == "__main__":
    key = jax.random.PRNGKey(0)
    k1, k2 = jax.random.split(key)
    N = 16384  # small: 64 KiB per input array
    targets = jax.random.normal(k1, (N,), dtype=jnp.float32)
    predictions = targets + 0.1 * jax.random.normal(k2, (N,), dtype=jnp.float32)

    ref = jax.block_until_ready(_reference_loss(predictions, targets))

    # Default (single large block) path.
    loss = jax.block_until_ready(weighted_class_loss_decay(predictions, targets))
    assert jnp.allclose(loss, ref, rtol=1e-5, atol=1e-6), (loss, ref)

    # Multi-step / multi-shard accumulation path.
    loss_multi = jax.block_until_ready(
        weighted_class_loss_decay(predictions, targets, max_block_rows=16))
    assert jnp.allclose(loss_multi, ref, rtol=1e-5, atol=1e-6), (loss_multi, ref)

    # Tail handling: N not a multiple of 1024.
    N2 = 5000
    p2, t2 = predictions[:N2], targets[:N2]
    ref2 = jax.block_until_ready(_reference_loss(p2, t2))
    loss2 = jax.block_until_ready(weighted_class_loss_decay(p2, t2))
    assert jnp.allclose(loss2, ref2, rtol=1e-5, atol=1e-6), (loss2, ref2)

    print("KERNEL_OK")
</pallas_src>

<mosaic_0001>
module attributes {stable_mosaic.version = 11 : i64} {
  func.func @_loss_kernel(%arg0: i32, %arg1: i32, %arg2: memref<6xf32, #tpu.memory_space<smem>>, %arg3: memref<128x128xf32, #tpu.memory_space<vmem>>, %arg4: memref<128x128xf32, #tpu.memory_space<vmem>>, %arg5: memref<8x128xf32, #tpu.memory_space<vmem>>) attributes {dimension_semantics = [#tpu.dimension_semantics<parallel>, #tpu.dimension_semantics<arbitrary>], iteration_bounds = array<i64: 1, 1>, scalar_prefetch = 1 : i64, scratch_operands = 0 : i64, tpu.core_type = #tpu.core_type<tc>, window_params = [{transform_indices = @transform_0, window_bounds = array<i64: 128, 128>}, {transform_indices = @transform_1, window_bounds = array<i64: 128, 128>}, {transform_indices = @transform_2, window_bounds = array<i64: 8, 128>}]} {
    %c0_i32 = arith.constant 0 : i32
    %0 = arith.cmpi eq, %arg1, %c0_i32 : i32
    %1 = arith.extui %0 : i1 to i32
    %c0_i32_0 = arith.constant 0 : i32
    %2 = arith.cmpi ne, %1, %c0_i32_0 : i32
    scf.if %2 {
      %cst_12 = arith.constant 0.000000e+00 : f32
      %38 = vector.broadcast %cst_12 : f32 to vector<8x128xf32>
      %c0_13 = arith.constant 0 : index
      %c0_14 = arith.constant 0 : index
      %39 = vector.load %arg5[%c0_13, %c0_14] : memref<8x128xf32, #tpu.memory_space<vmem>>, vector<8x128xf32>
      tpu.vector_store %arg5[%c0_13, %c0_14], %38 {strides = array<i32>} : memref<8x128xf32, #tpu.memory_space<vmem>>, vector<8x128xf32>,
    } else {
    }
    %c0_i32_1 = arith.constant 0 : i32
    %c128_i32 = arith.constant 128 : i32
    %3 = arith.muli %c0_i32_1, %c128_i32 : i32
    %4 = tpu.assume_multiple %3, 128 : i32
    %5 = arith.index_cast %4 : i32 to index
    %c0 = arith.constant 0 : index
    %6 = vector.load %arg4[%5, %c0] : memref<128x128xf32, #tpu.memory_space<vmem>>, vector<128x128xf32>
    %7 = arith.index_cast %4 : i32 to index
    %c0_2 = arith.constant 0 : index
    %8 = vector.load %arg3[%7, %c0_2] : memref<128x128xf32, #tpu.memory_space<vmem>>, vector<128x128xf32>
    %cst = arith.constant 6.250000e-02 : f32
    %9 = vector.broadcast %cst : f32 to vector<128x128xf32>
    %c1 = arith.constant 1 : index
    %10 = memref.load %arg2[%c1] : memref<6xf32, #tpu.memory_space<smem>>
    %11 = vector.broadcast %10 : f32 to vector<128x128xf32>
    %12 = arith.cmpf olt, %11, %6 : vector<128x128xf32>
    %cst_3 = arith.constant 1.250000e-01 : f32
    %13 = vector.broadcast %cst_3 : f32 to vector<128x128xf32>
    %14 = arith.select %12, %13, %9 : vector<128x128xi1>, vector<128x128xf32>
    %c2 = arith.constant 2 : index
    %15 = memref.load %arg2[%c2] : memref<6xf32, #tpu.memory_space<smem>>
    %16 = vector.broadcast %15 : f32 to vector<128x128xf32>
    %17 = arith.cmpf olt, %16, %6 : vector<128x128xf32>
    %cst_4 = arith.constant 2.500000e-01 : f32
    %18 = vector.broadcast %cst_4 : f32 to vector<128x128xf32>
    %19 = arith.select %17, %18, %14 : vector<128x128xi1>, vector<128x128xf32>
    %c3 = arith.constant 3 : index
    %20 = memref.load %arg2[%c3] : memref<6xf32, #tpu.memory_space<smem>>
    %21 = vector.broadcast %20 : f32 to vector<128x128xf32>
    %22 = arith.cmpf olt, %21, %6 : vector<128x128xf32>
    %cst_5 = arith.constant 5.000000e-01 : f32
    %23 = vector.broadcast %cst_5 : f32 to vector<128x128xf32>
    %24 = arith.select %22, %23, %19 : vector<128x128xi1>, vector<128x128xf32>
    %c4 = arith.constant 4 : index
    %25 = memref.load %arg2[%c4] : memref<6xf32, #tpu.memory_space<smem>>
    %26 = vector.broadcast %25 : f32 to vector<128x128xf32>
    %27 = arith.cmpf olt, %26, %6 : vector<128x128xf32>
    %cst_6 = arith.constant 1.000000e+00 : f32
    %28 = vector.broadcast %cst_6 : f32 to vector<128x128xf32>
    %29 = arith.select %27, %28, %24 : vector<128x128xi1>, vector<128x128xf32>
    %30 = arith.subf %8, %6 : vector<128x128xf32>
    %31 = arith.mulf %29, %30 : vector<128x128xf32>
    %32 = arith.mulf %31, %30 : vector<128x128xf32>
    %c0_7 = arith.constant 0 : index
    %c0_8 = arith.constant 0 : index
    %33 = vector.load %arg5[%c0_7, %c0_8] : memref<8x128xf32, #tpu.memory_space<vmem>>, vector<8x128xf32>
    %34 = vector.shape_cast %32 : vector<128x128xf32> to vector<16x8x128xf32>
    %cst_9 = arith.constant dense<0.000000e+00> : vector<8x128xf32>
    %35 = vector.multi_reduction <add>, %34, %cst_9 [0] : vector<16x8x128xf32> to vector<8x128xf32>
    %36 = arith.addf %33, %35 : vector<8x128xf32>
    %c0_10 = arith.constant 0 : index
    %c0_11 = arith.constant 0 : index
    %37 = vector.load %arg5[%c0_10, %c0_11] : memref<8x128xf32, #tpu.memory_space<vmem>>, vector<8x128xf32>
    tpu.vector_store %arg5[%c0_10, %c0_11], %36 {strides = array<i32>} : memref<8x128xf32, #tpu.memory_space<vmem>>, vector<8x128xf32>,
    %c1_i32 = arith.constant 1 : i32
    return
  }
  func.func @transform_0(%arg0: i32, %arg1: i32, %arg2: memref<6xf32, #tpu.memory_space<smem>>) -> (i32, i32) {
    %c1_i32 = arith.constant 1 : i32
    %0 = arith.muli %arg0, %c1_i32 : i32
    %1 = arith.addi %0, %arg1 : i32
    %c0_i32 = arith.constant 0 : i32
    %c0_i32_0 = arith.constant 0 : i32
    return %1, %c0_i32 : i32, i32
  }
  func.func @transform_1(%arg0: i32, %arg1: i32, %arg2: memref<6xf32, #tpu.memory_space<smem>>) -> (i32, i32) {
    %c1_i32 = arith.constant 1 : i32
    %0 = arith.muli %arg0, %c1_i32 : i32
    %1 = arith.addi %0, %arg1 : i32
    %c0_i32 = arith.constant 0 : i32
    %c0_i32_0 = arith.constant 0 : i32
    return %1, %c0_i32 : i32, i32
  }
  func.func @transform_2(%arg0: i32, %arg1: i32, %arg2: memref<6xf32, #tpu.memory_space<smem>>) -> (i32, i32) {
    %c0_i32 = arith.constant 0 : i32
    %c0_i32_0 = arith.constant 0 : i32
    return %arg0, %c0_i32 : i32, i32
  }
}

</mosaic_0001>

<llo_original>
// kernel: tpu_custom_call.1
$region0: #{tpu_custom_call.1}
  #allocation0 [shape = 'u32[]', space=smem, size = 0x4, offset = 0x4, fixed_abs, tag = 'smem constant byte address 0x4 - core index']
  #allocation1 [shape = 'u32[144,128]{1,0:T(1,128)}', space=vmem, size = 0x12000, scoped, tag = 'internal scratch']
  #allocation2 [shape = 's32[1]{0}', space=sflag, size = 0x4, scoped, tag = 'scoped memory for tpu_custom_call.1']
  #allocation3 [shape = 'u8[512]{0}', space=smem, size = 0x200, scoped, tag = 'prefetched SMEM operand 0']
  %s0 = inlined_call_operand.hbm [shape: f32[6], index: 0, kind: input, shape index: {}]
  %s1 = inlined_call_operand.hbm [shape: f32[128,128], index: 1, kind: input, shape index: {}]
  %s2 = inlined_call_operand.hbm [shape: f32[128,128], index: 2, kind: input, shape index: {}]
  %s3 = inlined_call_operand.hbm [shape: f32[8,128], index: 3, kind: output, shape index: {}]
  %s4 = sld [smem:[#allocation0]]
  $region30: #{tpu_custom_call.1} parent=0
    _
  %s6 = ssub.s32 1, %s4
  %s7 = scalar_select 0, %s6, %s4
  %9 = dma.hbm_to_smem %s0, 16, [#allocation3], [#allocation2]
  %10 = dma.done [#allocation2], 16
  %11 = sfence
  $region1: #{tpu_custom_call.1} parent=0
    #allocation4 [shape = 'u8[65536]{0}', space=vmem, size = 0x10000, scoped, tag = 'input window, operand 1, single buffered']
    #allocation5 [shape = 's32[1]{0}', space=sflag, size = 0x4, scoped, tag = 'scoped memory for tpu_custom_call.1']
    #allocation6 [shape = 's32[1]{0}', space=sflag, size = 0x4, scoped, tag = 'scoped memory for tpu_custom_call.1']
    #allocation7 [shape = 'u8[65536]{0}', space=vmem, size = 0x10000, scoped, tag = 'input window, operand 2, single buffered']
    #allocation8 [shape = 's32[1]{0}', space=sflag, size = 0x4, scoped, tag = 'scoped memory for tpu_custom_call.1']
    #allocation9 [shape = 'u8[4096]{0}', space=vmem, size = 0x1000, scoped, tag = 'output window, operand 0, single buffered']
    %12 = vsyncpa [#allocation5], 0
    %13 = vsyncpa [#allocation8], 0
    %14 = vsyncpa [#allocation6], 0
    // Predicated region
    $region2: #{tpu_custom_call.1} parent=1 // pred_check
      _
    $region3: #{tpu_custom_call.1} parent=1 // pred_check_branch
      %16 = sbr.rel (0) target = $region5
    $region4: #{tpu_custom_call.1} parent=1 // pred_region
      %s17 = sadd.s32 0, 0
      %s18 = smul.u32 16, %s17
      %s20 = ssub.s32 2048, 2048
      %21 = vsyncadd [#allocation5], %s20
      %s22 = smul.addr %s18, 128
      %s23 = scalar_lea.hbm %s1, %s22
      %s24 = sshll.u32 [#allocation4], 4
      %s25 = int_to_ptr.vmem [resolvable:$true] %s24
      %30 = dma.hbm_to_vmem [thread:$0]  %s23, 2048, %s25, [#allocation5], 128, 128, 8
    $region5: #{tpu_custom_call.1} parent=1 // pred_fallthru
      _
    // Predicated region
    $region6: #{tpu_custom_call.1} parent=1 // pred_check
      _
    $region7: #{tpu_custom_call.1} parent=1 // pred_check_branch
      %32 = sbr.rel (0) target = $region9
    $region8: #{tpu_custom_call.1} parent=1 // pred_region
      %s33 = sadd.s32 0, 0
      %s34 = smul.u32 16, %s33
      %s36 = ssub.s32 2048, 2048
      %37 = vsyncadd [#allocation8], %s36
      %s38 = smul.addr %s34, 128
      %s39 = scalar_lea.hbm %s2, %s38
      %s40 = sshll.u32 [#allocation7], 4
      %s41 = int_to_ptr.vmem [resolvable:$true] %s40
      %46 = dma.hbm_to_vmem [thread:$0]  %s39, 2048, %s41, [#allocation8], 128, 128, 8
    $region9: #{tpu_custom_call.1} parent=1 // pred_fallthru
      _
    // Predicated region
    $region10: #{tpu_custom_call.1} parent=1 // pred_check
      _
    $region11: #{tpu_custom_call.1} parent=1 // pred_check_branch
      %48 = sbr.rel (0) target = $region13
    $region12: #{tpu_custom_call.1} parent=1 // pred_region
      %49 = dma.done [#allocation5], 2048
    $region13: #{tpu_custom_call.1} parent=1 // pred_fallthru
      _
    // Predicated region
    $region14: #{tpu_custom_call.1} parent=1 // pred_check
      _
    $region15: #{tpu_custom_call.1} parent=1 // pred_check_branch
      %51 = sbr.rel (0) target = $region17
    $region16: #{tpu_custom_call.1} parent=1 // pred_region
      %52 = dma.done [#allocation8], 2048
    $region17: #{tpu_custom_call.1} parent=1 // pred_fallthru
      _
    %s53 = sadd.s32 0, 0
    %s54 = smul.u32 16, %s53
    %s55 = sadd.s32 0, 0
    %s56 = smul.u32 16, %s55
    %p57 = scmp.eq.s32.totalorder 0, 0
    // Predicated region
    $region18: #{tpu_custom_call.1} parent=1 // pred_check
      %p58 = pneg %p57
    $region19: #{tpu_custom_call.1} parent=1 // pred_check_branch
      %60 = sbr.rel (%p58) target = $region21
    $region20: #{tpu_custom_call.1} parent=1 // pred_region
      %61 = vst [vmem:[#allocation9] sm:$0xff] 0.0
    $region21: #{tpu_custom_call.1} parent=1 // pred_fallthru
      _
    %v62 = vld [vmem:[#allocation7] sm:$0xff]
    %v63 = vld [vmem:[#allocation7 + $0x8] sm:$0xff]
    %v64 = vld [vmem:[#allocation7 + $0x10] sm:$0xff]
    %v65 = vld [vmem:[#allocation7 + $0x18] sm:$0xff]
    %v66 = vld [vmem:[#allocation7 + $0x20] sm:$0xff]
    %v67 = vld [vmem:[#allocation7 + $0x28] sm:$0xff]
    %v68 = vld [vmem:[#allocation7 + $0x30] sm:$0xff]
    %v69 = vld [vmem:[#allocation7 + $0x38] sm:$0xff]
    %v70 = vld [vmem:[#allocation7 + $0x40] sm:$0xff]
    %v71 = vld [vmem:[#allocation7 + $0x48] sm:$0xff]
    %v72 = vld [vmem:[#allocation7 + $0x50] sm:$0xff]
    %v73 = vld [vmem:[#allocation7 + $0x58] sm:$0xff]
    %v74 = vld [vmem:[#allocation7 + $0x60] sm:$0xff]
    %v75 = vld [vmem:[#allocation7 + $0x68] sm:$0xff]
    %v76 = vld [vmem:[#allocation7 + $0x70] sm:$0xff]
    %v77 = vld [vmem:[#allocation7 + $0x78] sm:$0xff]
    %v78 = vld [vmem:[#allocation4] sm:$0xff]
    %v79 = vld [vmem:[#allocation4 + $0x8] sm:$0xff]
    %v80 = vld [vmem:[#allocation4 + $0x10] sm:$0xff]
    %v81 = vld [vmem:[#allocation4 + $0x18] sm:$0xff]
    %v82 = vld [vmem:[#allocation4 + $0x20] sm:$0xff]
    %v83 = vld [vmem:[#allocation4 + $0x28] sm:$0xff]
    %v84 = vld [vmem:[#allocation4 + $0x30] sm:$0xff]
    %v85 = vld [vmem:[#allocation4 + $0x38] sm:$0xff]
    %v86 = vld [vmem:[#allocation4 + $0x40] sm:$0xff]
    %v87 = vld [vmem:[#allocation4 + $0x48] sm:$0xff]
    %v88 = vld [vmem:[#allocation4 + $0x50] sm:$0xff]
    %v89 = vld [vmem:[#allocation4 + $0x58] sm:$0xff]
    %v90 = vld [vmem:[#allocation4 + $0x60] sm:$0xff]
    %v91 = vld [vmem:[#allocation4 + $0x68] sm:$0xff]
    %v92 = vld [vmem:[#allocation4 + $0x70] sm:$0xff]
    %v93 = vld [vmem:[#allocation4 + $0x78] sm:$0xff]
    %s94 = sld [smem:[#allocation3 + $0x1]]
    %v95 = vstv %s94
    %vm96 = vcmp.lt.f32.partialorder %v95, %v62
    %vm97 = vcmp.lt.f32.partialorder %v95, %v63
    %vm98 = vcmp.lt.f32.partialorder %v95, %v64
    %vm99 = vcmp.lt.f32.partialorder %v95, %v65
    %vm100 = vcmp.lt.f32.partialorder %v95, %v66
    %vm101 = vcmp.lt.f32.partialorder %v95, %v67
    %vm102 = vcmp.lt.f32.partialorder %v95, %v68
    %vm103 = vcmp.lt.f32.partialorder %v95, %v69
    %vm104 = vcmp.lt.f32.partialorder %v95, %v70
    %vm105 = vcmp.lt.f32.partialorder %v95, %v71
    %vm106 = vcmp.lt.f32.partialorder %v95, %v72
    %vm107 = vcmp.lt.f32.partialorder %v95, %v73
    %vm108 = vcmp.lt.f32.partialorder %v95, %v74
    %vm109 = vcmp.lt.f32.partialorder %v95, %v75
    %vm110 = vcmp.lt.f32.partialorder %v95, %v76
    %vm111 = vcmp.lt.f32.partialorder %v95, %v77
    %v112 = vsel %vm96, 0.125, 0.0625
    %v113 = vsel %vm97, 0.125, 0.0625
    %v114 = vsel %vm98, 0.125, 0.0625
    %v115 = vsel %vm99, 0.125, 0.0625
    %v116 = vsel %vm100, 0.125, 0.0625
    %v117 = vsel %vm101, 0.125, 0.0625
    %v118 = vsel %vm102, 0.125, 0.0625
    %v119 = vsel %vm103, 0.125, 0.0625
    %v120 = vsel %vm104, 0.125, 0.0625
    %v121 = vsel %vm105, 0.125, 0.0625
    %v122 = vsel %vm106, 0.125, 0.0625
    %v123 = vsel %vm107, 0.125, 0.0625
    %v124 = vsel %vm108, 0.125, 0.0625
    %v125 = vsel %vm109, 0.125, 0.0625
    %v126 = vsel %vm110, 0.125, 0.0625
    %v127 = vsel %vm111, 0.125, 0.0625
    %s128 = sld [smem:[#allocation3 + $0x2]]
    %v129 = vstv %s128
    %vm130 = vcmp.lt.f32.partialorder %v129, %v62
    %vm131 = vcmp.lt.f32.partialorder %v129, %v63
    %vm132 = vcmp.lt.f32.partialorder %v129, %v64
    %vm133 = vcmp.lt.f32.partialorder %v129, %v65
    %vm134 = vcmp.lt.f32.partialorder %v129, %v66
    %vm135 = vcmp.lt.f32.partialorder %v129, %v67
    %vm136 = vcmp.lt.f32.partialorder %v129, %v68
    %vm137 = vcmp.lt.f32.partialorder %v129, %v69
    %vm138 = vcmp.lt.f32.partialorder %v129, %v70
    %vm139 = vcmp.lt.f32.partialorder %v129, %v71
    %vm140 = vcmp.lt.f32.partialorder %v129, %v72
    %vm141 = vcmp.lt.f32.partialorder %v129, %v73
    %vm142 = vcmp.lt.f32.partialorder %v129, %v74
    %vm143 = vcmp.lt.f32.partialorder %v129, %v75
    %vm144 = vcmp.lt.f32.partialorder %v129, %v76
    %vm145 = vcmp.lt.f32.partialorder %v129, %v77
    %v146 = vsel %vm130, 0.25, %v112
    %v147 = vsel %vm131, 0.25, %v113
    %v148 = vsel %vm132, 0.25, %v114
    %v149 = vsel %vm133, 0.25, %v115
    %v150 = vsel %vm134, 0.25, %v116
    %v151 = vsel %vm135, 0.25, %v117
    %v152 = vsel %vm136, 0.25, %v118
    %v153 = vsel %vm137, 0.25, %v119
    %v154 = vsel %vm138, 0.25, %v120
    %v155 = vsel %vm139, 0.25, %v121
    %v156 = vsel %vm140, 0.25, %v122
    %v157 = vsel %vm141, 0.25, %v123
    %v158 = vsel %vm142, 0.25, %v124
    %v159 = vsel %vm143, 0.25, %v125
    %v160 = vsel %vm144, 0.25, %v126
    %v161 = vsel %vm145, 0.25, %v127
    %s162 = sld [smem:[#allocation3 + $0x3]]
    %v163 = vstv %s162
    %vm164 = vcmp.lt.f32.partialorder %v163, %v62
    %vm165 = vcmp.lt.f32.partialorder %v163, %v63
    %vm166 = vcmp.lt.f32.partialorder %v163, %v64
    %vm167 = vcmp.lt.f32.partialorder %v163, %v65
    %vm168 = vcmp.lt.f32.partialorder %v163, %v66
    %vm169 = vcmp.lt.f32.partialorder %v163, %v67
    %vm170 = vcmp.lt.f32.partialorder %v163, %v68
    %vm171 = vcmp.lt.f32.partialorder %v163, %v69
    %vm172 = vcmp.lt.f32.partialorder %v163, %v70
    %vm173 = vcmp.lt.f32.partialorder %v163, %v71
    %vm174 = vcmp.lt.f32.partialorder %v163, %v72
    %vm175 = vcmp.lt.f32.partialorder %v163, %v73
    %vm176 = vcmp.lt.f32.partialorder %v163, %v74
    %vm177 = vcmp.lt.f32.partialorder %v163, %v75
    %vm178 = vcmp.lt.f32.partialorder %v163, %v76
    %vm179 = vcmp.lt.f32.partialorder %v163, %v77
    %v180 = vsel %vm164, 0.5, %v146
    %v181 = vsel %vm165, 0.5, %v147
    %v182 = vsel %vm166, 0.5, %v148
    %v183 = vsel %vm167, 0.5, %v149
    %v184 = vsel %vm168, 0.5, %v150
    %v185 = vsel %vm169, 0.5, %v151
    %v186 = vsel %vm170, 0.5, %v152
    %v187 = vsel %vm171, 0.5, %v153
    %v188 = vsel %vm172, 0.5, %v154
    %v189 = vsel %vm173, 0.5, %v155
    %v190 = vsel %vm174, 0.5, %v156
    %v191 = vsel %vm175, 0.5, %v157
    %v192 = vsel %vm176, 0.5, %v158
    %v193 = vsel %vm177, 0.5, %v159
    %v194 = vsel %vm178, 0.5, %v160
    %v195 = vsel %vm179, 0.5, %v161
    %s196 = sld [smem:[#allocation3 + $0x4]]
    %v197 = vstv %s196
    %vm198 = vcmp.lt.f32.partialorder %v197, %v62
    %vm199 = vcmp.lt.f32.partialorder %v197, %v63
    %vm200 = vcmp.lt.f32.partialorder %v197, %v64
    %vm201 = vcmp.lt.f32.partialorder %v197, %v65
    %vm202 = vcmp.lt.f32.partialorder %v197, %v66
    %vm203 = vcmp.lt.f32.partialorder %v197, %v67
    %vm204 = vcmp.lt.f32.partialorder %v197, %v68
    %vm205 = vcmp.lt.f32.partialorder %v197, %v69
    %vm206 = vcmp.lt.f32.partialorder %v197, %v70
    %vm207 = vcmp.lt.f32.partialorder %v197, %v71
    %vm208 = vcmp.lt.f32.partialorder %v197, %v72
    %vm209 = vcmp.lt.f32.partialorder %v197, %v73
    %vm210 = vcmp.lt.f32.partialorder %v197, %v74
    %vm211 = vcmp.lt.f32.partialorder %v197, %v75
    %vm212 = vcmp.lt.f32.partialorder %v197, %v76
    %vm213 = vcmp.lt.f32.partialorder %v197, %v77
    %v214 = vsel %vm198, 1.0, %v180
    %v215 = vsel %vm199, 1.0, %v181
    %v216 = vsel %vm200, 1.0, %v182
    %v217 = vsel %vm201, 1.0, %v183
    %v218 = vsel %vm202, 1.0, %v184
    %v219 = vsel %vm203, 1.0, %v185
    %v220 = vsel %vm204, 1.0, %v186
    %v221 = vsel %vm205, 1.0, %v187
    %v222 = vsel %vm206, 1.0, %v188
    %v223 = vsel %vm207, 1.0, %v189
    %v224 = vsel %vm208, 1.0, %v190
    %v225 = vsel %vm209, 1.0, %v191
    %v226 = vsel %vm210, 1.0, %v192
    %v227 = vsel %vm211, 1.0, %v193
    %v228 = vsel %vm212, 1.0, %v194
    %v229 = vsel %vm213, 1.0, %v195
    %v230 = vsub.f32 %v78, %v62
    %v231 = vsub.f32 %v79, %v63
    %v232 = vsub.f32 %v80, %v64
    %v233 = vsub.f32 %v81, %v65
    %v234 = vsub.f32 %v82, %v66
    %v235 = vsub.f32 %v83, %v67
    %v236 = vsub.f32 %v84, %v68
    %v237 = vsub.f32 %v85, %v69
    %v238 = vsub.f32 %v86, %v70
    %v239 = vsub.f32 %v87, %v71
    %v240 = vsub.f32 %v88, %v72
    %v241 = vsub.f32 %v89, %v73
    %v242 = vsub.f32 %v90, %v74
    %v243 = vsub.f32 %v91, %v75
    %v244 = vsub.f32 %v92, %v76
    %v245 = vsub.f32 %v93, %v77
    %v246 = vmul.f32 %v214, %v230
    %v247 = vmul.f32 %v215, %v231
    %v248 = vmul.f32 %v216, %v232
    %v249 = vmul.f32 %v217, %v233
    %v250 = vmul.f32 %v218, %v234
    %v251 = vmul.f32 %v219, %v235
    %v252 = vmul.f32 %v220, %v236
    %v253 = vmul.f32 %v221, %v237
    %v254 = vmul.f32 %v222, %v238
    %v255 = vmul.f32 %v223, %v239
    %v256 = vmul.f32 %v224, %v240
    %v257 = vmul.f32 %v225, %v241
    %v258 = vmul.f32 %v226, %v242
    %v259 = vmul.f32 %v227, %v243
    %v260 = vmul.f32 %v228, %v244
    %v261 = vmul.f32 %v229, %v245
    %v262 = vmul.f32 %v246, %v230
    %v263 = vmul.f32 %v247, %v231
    %v264 = vmul.f32 %v248, %v232
    %v265 = vmul.f32 %v249, %v233
    %v266 = vmul.f32 %v250, %v234
    %v267 = vmul.f32 %v251, %v235
    %v268 = vmul.f32 %v252, %v236
    %v269 = vmul.f32 %v253, %v237
    %v270 = vmul.f32 %v254, %v238
    %v271 = vmul.f32 %v255, %v239
    %v272 = vmul.f32 %v256, %v240
    %v273 = vmul.f32 %v257, %v241
    %v274 = vmul.f32 %v258, %v242
    %v275 = vmul.f32 %v259, %v243
    %v276 = vmul.f32 %v260, %v244
    %v277 = vmul.f32 %v261, %v245
    %v278 = vld [vmem:[#allocation9] sm:$0xff]
    %v279 = vadd.f32 %v262, %v263
    %v280 = vadd.f32 %v279, %v264
    %v281 = vadd.f32 %v280, %v265
    %v282 = vadd.f32 %v281, %v266
    %v283 = vadd.f32 %v282, %v267
    %v284 = vadd.f32 %v283, %v268
    %v285 = vadd.f32 %v284, %v269
    %v286 = vadd.f32 %v285, %v270
    %v287 = vadd.f32 %v286, %v271
    %v288 = vadd.f32 %v287, %v272
    %v289 = vadd.f32 %v288, %v273
    %v290 = vadd.f32 %v289, %v274
    %v291 = vadd.f32 %v290, %v275
    %v292 = vadd.f32 %v291, %v276
    %v293 = vadd.f32 %v292, %v277
    %v294 = vadd.f32 %v278, %v293
    %295 = vst [vmem:[#allocation9] sm:$0xff] %v294
    // Predicated region
    $region22: #{tpu_custom_call.1} parent=1 // pred_check
      _
    $region23: #{tpu_custom_call.1} parent=1 // pred_check_branch
      %297 = sbr.rel (0) target = $region25
    $region24: #{tpu_custom_call.1} parent=1 // pred_region
      %s299 = ssub.s32 128, 128
      %300 = vsyncadd [#allocation6], %s299
      %s302 = sshll.u32 [#allocation9], 4
      %s303 = int_to_ptr.vmem [resolvable:$true] %s302
      %305 = dma.vmem_to_hbm [thread:$0]  %s303, 128, %s3, [#allocation6]
    $region25: #{tpu_custom_call.1} parent=1 // pred_fallthru
      _
    // Predicated region
    $region26: #{tpu_custom_call.1} parent=1 // pred_check
      _
    $region27: #{tpu_custom_call.1} parent=1 // pred_check_branch
      %307 = sbr.rel (0) target = $region29
    $region28: #{tpu_custom_call.1} parent=1 // pred_region
      %308 = dma.done [#allocation6], 128
    $region29: #{tpu_custom_call.1} parent=1 // pred_fallthru
      _
    %309 = vsyncpa [#allocation5], 1
    %310 = vsyncpa [#allocation8], 1
    %311 = vsyncpa [#allocation6], 1

</llo_original>
